<compile_context>
chip_gen: v7x
topology: tpu7x:2x2x1
jax: 0.10.0
libtpu: 0.0.40
codegen_flags: <defaults>
</compile_context>

<pallas_src>
import functools

import jax
import jax.numpy as jnp
from jax.experimental import pallas as pl
from jax.experimental.pallas import tpu as pltpu


def _round_up(x, m):
    return ((x + m - 1) // m) * m


def _cdiv(a, b):
    return -(-a // b)


def _tpu_vmem_bytes():
    """Physical VMEM bytes per TensorCore (conservative fallback if unknown)."""
    try:
        info = pltpu.get_tpu_info()
        v = getattr(info, "vmem_capacity_bytes", None)
        if v:
            return int(v)
    except Exception:
        pass
    return 64 * 1024 * 1024  # v7x-class conservative default


def _dice_sums_kernel(pred_ref, tgt_ref, out_ref, *, num_classes, ignore_index,
                      hw, tm, tiles_per_split, n_tiles, needs_mask, naive_dice):
    """Accumulates per-class sums over the flattened pixel axis.

    pred_ref: (C, TM) logits tile (native dtype, upcast here)
    tgt_ref:  (1, TM) integer labels tile (native int dtype, widened here)
    out_ref:  (C, 3) f32 accumulator, resident across the tile axis:
      lane 0: sum(p * t)
      lane 1: sum(p * p)  (standard dice)   or   sum(p)  (naive dice)
      lane 2: sum(t)      (== sum(t*t), t is binary)
    """
    c_split = pl.program_id(0)
    j = pl.program_id(2)
    g = c_split * tiles_per_split + j          # global tile index along HW

    @pl.when(j == 0)
    def _init():
        out_ref[...] = jnp.zeros_like(out_ref)

    logits = pred_ref[...].astype(jnp.float32)        # (C, TM) f32
    tgt = tgt_ref[...].astype(jnp.int32)              # (1, TM) int32

    # (C, 1) sublane iota -- broadcast against labels (no materialized
    # (C, TM) int32 constant per grid step).
    class_ids = jax.lax.broadcasted_iota(jnp.int32, (num_classes, 1), 0)
    # (1, 3) lane iota to pack num/den/tsum into one accumulator update.
    lane3 = jax.lax.broadcasted_iota(jnp.int32, (1, 3), 1)

    def accumulate(logits, tgt, inbounds):
        # softmax over the class (sublane) axis
        mx = jnp.max(logits, axis=0, keepdims=True)
        ex = jnp.exp(logits - mx)
        # Exact reciprocal on the (1, TM) denominator: exp dominates the EUP
        # slot, so the exact version is effectively free and keeps numerics
        # aligned with the reference.
        p = ex * pl.reciprocal(jnp.sum(ex, axis=0, keepdims=True), approx=False)
        if inbounds is not None:
            p = jnp.where(inbounds, p, 0.0)           # zero out-of-bounds cols

        valid = tgt != ignore_index                   # (1, TM) bool
        tclip = jnp.clip(tgt, 0, num_classes - 1)
        t = jnp.where((tclip == class_ids) & valid, 1.0, 0.0)     # (C, TM) f32

        num = jnp.sum(p * t, axis=1, keepdims=True)               # (C, 1)
        if naive_dice:
            den = jnp.sum(p, axis=1, keepdims=True)               # sum(p)
        else:
            den = jnp.sum(p * p, axis=1, keepdims=True)           # sum(p*p)
        tsum = jnp.sum(t, axis=1, keepdims=True)                  # sum(t)

        # Single (C, 3) RMW instead of three masked sub-lane RMWs.
        upd = jnp.where(lane3 == 0, num, jnp.where(lane3 == 1, den, tsum))
        out_ref[...] += upd

    if not needs_mask:
        # Tile size divides HW and no overflow steps: static fast path.
        accumulate(logits, tgt, None)
    else:
        full_tiles = hw // tm        # tiles entirely in bounds

        @pl.when(g < full_tiles)
        def _interior():
            accumulate(logits, tgt, None)

        if hw % tm != 0:
            # Ragged last tile: scrub the undefined out-of-bounds region
            # before exp / label compares.  Fully-out-of-range overflow steps
            # (from the core split) skip compute entirely via g < n_tiles.
            @pl.when((g >= full_tiles) & (g < n_tiles))
            def _boundary():
                col = jax.lax.broadcasted_iota(jnp.int32, (1, tm), 1)
                inbounds = (g * tm + col) < hw                    # (1, TM)
                safe_logits = jnp.where(inbounds, logits, 0.0)
                safe_tgt = jnp.where(inbounds, tgt, jnp.int32(ignore_index))
                accumulate(safe_logits, safe_tgt, inbounds)


def my_dice_loss(pred, target, *, eps=1e-3, naive_dice=False, loss_weight=1.0,
                 ignore_index=255, class_weight=None, tm=None,
                 vmem_limit_bytes=None, num_core_splits=None):
    """Matches MyDiceLoss.forward with reduction='mean', avg_factor=None.

    pred:   (N, C, H, W) float logits (NCHW, like PyTorch; f32 or bf16)
    target: (N, H, W) integer labels (int32 / uint8 / int8 all streamed as-is)
    returns scalar float32 loss.
    """
    N, C, H, W = pred.shape
    if C == 1:
        # TODO(synk): single-channel sigmoid path of MyDiceLoss not implemented.
        raise NotImplementedError("multi-class (softmax) path only")
    HW = H * W

    # Free reshapes only -- no transpose, no pad, no host-side cast passes.
    pred_r = pred.reshape(N, C, HW)
    if jnp.issubdtype(target.dtype, jnp.integer):
        tgt_r = target.reshape(N, 1, HW)          # stream labels at native width
    else:
        tgt_r = target.astype(jnp.int32).reshape(N, 1, HW)

    # Generation-aware VMEM budget: v5e/v6e have 128 MiB physical VMEM per
    # core, v7x has 64 MiB.  f32 intermediates are ~6x the f32 tile size on
    # top of the double-buffered native-dtype input, so keep plenty of slack.
    phys_vmem = _tpu_vmem_bytes()
    if phys_vmem >= 100 * 1024 * 1024:            # v5e / v6e class
        tile_f32_bytes = 4 * 1024 * 1024          # ~4 MiB of f32 logits / step
        default_vmem_limit = 80 * 1024 * 1024
    else:                                         # v7x class (64 MiB VMEM)
        tile_f32_bytes = 2 * 1024 * 1024
        default_vmem_limit = 44 * 1024 * 1024
    if vmem_limit_bytes is None:
        vmem_limit_bytes = default_vmem_limit

    # Tile size: go straight to the VMEM-derived cap (per-grid-step fixed
    # overhead otherwise rivals DMA time for small C).
    tm_cap = max(128, ((tile_f32_bytes // (4 * C)) // 128) * 128)
    tm_eff = tm_cap if tm is None else max(128, (int(tm) // 128) * 128)
    tm_eff = min(tm_eff, _round_up(HW, 128))
    n_tiles = _cdiv(HW, tm_eff)

    # Split the tile axis across a leading "parallel" axis so v7x's two
    # TensorCores both work even at N == 1 (harmless loop on v5e/v6e).
    if num_core_splits is None:
        num_core_splits = 2 if n_tiles >= 2 else 1
    num_core_splits = max(1, min(int(num_core_splits), n_tiles))
    tiles_per_split = _cdiv(n_tiles, num_core_splits)
    overflow = num_core_splits * tiles_per_split > n_tiles
    needs_mask = (HW % tm_eff != 0) or overflow

    def data_index_map(c, n, j):
        g = c * tiles_per_split + j
        if overflow:
            g = jnp.minimum(g, n_tiles - 1)   # last split may run past HW
        return (n, 0, g)

    kernel = functools.partial(
        _dice_sums_kernel, num_classes=C, ignore_index=ignore_index,
        hw=HW, tm=tm_eff, tiles_per_split=tiles_per_split, n_tiles=n_tiles,
        needs_mask=needs_mask, naive_dice=bool(naive_dice))

    sums = pl.pallas_call(
        kernel,
        out_shape=jax.ShapeDtypeStruct((num_core_splits, N, C, 3), jnp.float32),
        grid_spec=pltpu.PrefetchScalarGridSpec(
            num_scalar_prefetch=0,
            grid=(num_core_splits, N, tiles_per_split),
            in_specs=[
                pl.BlockSpec((pl.Squeezed(), C, tm_eff), data_index_map),
                pl.BlockSpec((pl.Squeezed(), 1, tm_eff), data_index_map),
            ],
            out_specs=pl.BlockSpec((pl.Squeezed(), pl.Squeezed(), C, 3),
                                   lambda c, n, j: (c, n, 0, 0)),
        ),
        compiler_params=pltpu.CompilerParams(
            dimension_semantics=("parallel", "parallel", "arbitrary"),
            vmem_limit_bytes=vmem_limit_bytes),
    )(pred_r, tgt_r)

    # Combine per-(core-split, batch) partial sums -> global per-class sums.
    # (binary_dice_loss default batch=True sums over batch AND pixels before
    # forming the dice ratio, which is what we do here.)
    sums = jnp.sum(sums, axis=(0, 1))             # (C, 3)
    num, den, tsum = sums[:, 0], sums[:, 1], sums[:, 2]

    if naive_dice:
        d = (2.0 * num + eps) / (den + tsum + eps)       # den == sum(p)
    else:
        d = 2.0 * num / (den + tsum + eps)               # den == sum(p*p)
    per_class = 1.0 - d                                  # (C,)

    if class_weight is not None:
        per_class = per_class * jnp.asarray(class_weight, jnp.float32)

    # dice_loss skips class index == ignore_index (never happens for C < 255).
    keep = jnp.arange(C) != ignore_index
    total = jnp.sum(jnp.where(keep, per_class, 0.0)) / C
    return jnp.float32(loss_weight) * total


def _reference_dice_loss(pred, target, *, eps=1e-3, naive_dice=False,
                         loss_weight=1.0, ignore_index=255, class_weight=None):
    """Pure-JAX reimplementation of the PyTorch forward for verification."""
    C = pred.shape[1]
    target = target.astype(jnp.int32)
    p = jax.nn.softmax(pred.astype(jnp.float32), axis=1)            # (N,C,H,W)
    one_hot = jax.nn.one_hot(jnp.clip(target, 0, C - 1), C,
                             dtype=jnp.float32)                      # (N,H,W,C)
    valid = (target != ignore_index).astype(jnp.float32)             # (N,H,W)
    total = 0.0
    for i in range(C):
        if i == ignore_index:
            continue
        pi = p[:, i]
        ti = one_hot[..., i] * valid
        n = jnp.sum(pi * ti)
        if naive_dice:
            d = (2.0 * n + eps) / (jnp.sum(pi) + jnp.sum(ti) + eps)
        else:
            d = 2.0 * n / (jnp.sum(pi * pi) + jnp.sum(ti * ti) + eps)
        li = 1.0 - d
        if class_weight is not None:
            li = li * class_weight[i]
        total = total + li
    return loss_weight * total / C


if __name__ == "__main__":
    key = jax.random.PRNGKey(0)
    keys = jax.random.split(key, 9)

    # Case 1: standard NCHW segmentation logits, default (non-naive) dice,
    # auto tile size (single tile), no core split.
    N, C, H, W = 2, 4, 16, 16
    pred = jax.random.normal(keys[0], (N, C, H, W), dtype=jnp.float32)
    target = jax.random.randint(keys[1], (N, H, W), 0, C, dtype=jnp.int32)
    target = jnp.where(jax.random.uniform(keys[2], (N, H, W)) < 0.1,
                       jnp.int32(255), target)

    loss = jax.block_until_ready(
        my_dice_loss(pred, target, eps=1e-3, naive_dice=False,
                     loss_weight=1.0, ignore_index=255))
    ref = jax.block_until_ready(
        _reference_dice_loss(pred, target, eps=1e-3, naive_dice=False,
                             loss_weight=1.0, ignore_index=255))
    assert jnp.allclose(loss, ref, rtol=1e-4, atol=1e-4), (loss, ref)

    # Case 2: ragged spatial size (HW=255), naive dice, class weights, forced
    # small tile -> two tiles split across the core axis, masked last tile.
    N2, C2, H2, W2 = 2, 5, 15, 17
    pred2 = jax.random.normal(keys[3], (N2, C2, H2, W2), dtype=jnp.float32)
    target2 = jax.random.randint(keys[4], (N2, H2, W2), 0, C2, dtype=jnp.int32)
    target2 = jnp.where(jax.random.uniform(keys[5], (N2, H2, W2)) < 0.15,
                        jnp.int32(255), target2)
    cw = [1.0, 0.5, 2.0, 1.0, 0.75]

    loss2 = jax.block_until_ready(
        my_dice_loss(pred2, target2, eps=1e-3, naive_dice=True,
                     loss_weight=1.0, ignore_index=255, class_weight=cw,
                     tm=128))
    ref2 = jax.block_until_ready(
        _reference_dice_loss(pred2, target2, eps=1e-3, naive_dice=True,
                             loss_weight=1.0, ignore_index=255,
                             class_weight=cw))
    assert jnp.allclose(loss2, ref2, rtol=1e-4, atol=1e-4), (loss2, ref2)

    # Case 3: bf16 logits + uint8 labels streamed in native dtypes, odd tile
    # count (5 tiles, 2 splits) so the core split has an overflow step,
    # multi-tile accumulation per split, masked boundary tile.
    N3, C3, H3, W3 = 1, 3, 23, 23
    pred3 = jax.random.normal(keys[6], (N3, C3, H3, W3),
                              dtype=jnp.float32).astype(jnp.bfloat16)
    target3 = jax.random.randint(keys[7], (N3, H3, W3), 0, C3,
                                 dtype=jnp.int32).astype(jnp.uint8)
    target3 = jnp.where(jax.random.uniform(keys[8], (N3, H3, W3)) < 0.2,
                        jnp.uint8(255), target3)

    loss3 = jax.block_until_ready(
        my_dice_loss(pred3, target3, eps=1e-3, naive_dice=False,
                     loss_weight=2.0, ignore_index=255, tm=128))
    ref3 = jax.block_until_ready(
        _reference_dice_loss(pred3.astype(jnp.float32), target3, eps=1e-3,
                             naive_dice=False, loss_weight=2.0,
                             ignore_index=255))
    assert jnp.allclose(loss3, ref3, rtol=1e-4, atol=1e-4), (loss3, ref3)

    print("KERNEL_OK")
</pallas_src>

<mosaic_0001>
module attributes {stable_mosaic.version = 11 : i64} {
  func.func @_dice_sums_kernel(%arg0: i32, %arg1: i32, %arg2: i32, %arg3: memref<1x4x256xf32, #tpu.memory_space<vmem>>, %arg4: memref<1x1x256xi32, #tpu.memory_space<vmem>>, %arg5: memref<1x1x4x3xf32, #tpu.memory_space<vmem>>) attributes {dimension_semantics = [#tpu.dimension_semantics<parallel>, #tpu.dimension_semantics<parallel>, #tpu.dimension_semantics<arbitrary>], iteration_bounds = array<i64: 1, 2, 1>, scalar_prefetch = 0 : i64, scratch_operands = 0 : i64, tpu.core_type = #tpu.core_type<tc>, window_params = [{transform_indices = @transform_0, window_bounds = array<i64: 1, 4, 256>}, {transform_indices = @transform_1, window_bounds = array<i64: 1, 1, 256>}, {transform_indices = @transform_2, window_bounds = array<i64: 1, 1, 4, 3>}]} {
    %c0_i32 = arith.constant 0 : i32
    %0 = arith.cmpi eq, %arg2, %c0_i32 : i32
    %1 = arith.extui %0 : i1 to i32
    %c0_i32_0 = arith.constant 0 : i32
    %2 = arith.cmpi ne, %1, %c0_i32_0 : i32
    scf.if %2 {
      %cst_22 = arith.constant 0.000000e+00 : f32
      %63 = vector.broadcast %cst_22 : f32 to vector<4x3xf32>
      %c0_23 = arith.constant 0 : index
      %c0_24 = arith.constant 0 : index
      %c0_25 = arith.constant 0 : index
      %c0_26 = arith.constant 0 : index
      %64 = vector.load %arg5[%c0_23, %c0_24, %c0_25, %c0_26] : memref<1x1x4x3xf32, #tpu.memory_space<vmem>>, vector<1x1x4x3xf32>
      %65 = vector.shape_cast %64 : vector<1x1x4x3xf32> to vector<4x3xf32>
      %66 = vector.shape_cast %63 : vector<4x3xf32> to vector<1x1x4x3xf32>
      tpu.vector_store %arg5[%c0_23, %c0_24, %c0_25, %c0_26], %66 {strides = array<i32>} : memref<1x1x4x3xf32, #tpu.memory_space<vmem>>, vector<1x1x4x3xf32>,
    } else {
    }
    %c0 = arith.constant 0 : index
    %c0_1 = arith.constant 0 : index
    %c0_2 = arith.constant 0 : index
    %3 = vector.load %arg3[%c0, %c0_1, %c0_2] : memref<1x4x256xf32, #tpu.memory_space<vmem>>, vector<1x4x256xf32>
    %4 = vector.shape_cast %3 : vector<1x4x256xf32> to vector<4x256xf32>
    %c0_3 = arith.constant 0 : index
    %c0_4 = arith.constant 0 : index
    %c0_5 = arith.constant 0 : index
    %5 = vector.load %arg4[%c0_3, %c0_4, %c0_5] : memref<1x1x256xi32, #tpu.memory_space<vmem>>, vector<1x1x256xi32>
    %6 = vector.shape_cast %5 : vector<1x1x256xi32> to vector<1x256xi32>
    %7 = tpu.iota {dimensions = array<i32: 0>} : vector<4x1xi32>
    %8 = tpu.iota {dimensions = array<i32: 1>} : vector<1x3xi32>
    %cst = arith.constant dense<0xFF800000> : vector<256xf32>
    %9 = vector.multi_reduction <maximumf>, %4, %cst [0] : vector<4x256xf32> to vector<256xf32>
    %10 = vector.shape_cast %9 : vector<256xf32> to vector<1x256xf32>
    %11 = vector.broadcast %10 : vector<1x256xf32> to vector<4x256xf32>
    %12 = arith.subf %4, %11 : vector<4x256xf32>
    %13 = math.exp %12 : vector<4x256xf32>
    %cst_6 = arith.constant dense<0.000000e+00> : vector<256xf32>
    %14 = vector.multi_reduction <add>, %13, %cst_6 [0] : vector<4x256xf32> to vector<256xf32>
    %15 = vector.shape_cast %14 : vector<256xf32> to vector<1x256xf32>
    %16 = tpu.reciprocal %15 : vector<1x256xf32> -> vector<1x256xf32>
    %17 = vector.broadcast %16 : vector<1x256xf32> to vector<4x256xf32>
    %18 = arith.mulf %13, %17 : vector<4x256xf32>
    %c255_i32 = arith.constant 255 : i32
    %19 = vector.broadcast %c255_i32 : i32 to vector<1x256xi32>
    %20 = arith.cmpi ne, %6, %19 : vector<1x256xi32>
    %c0_i32_7 = arith.constant 0 : i32
    %c3_i32 = arith.constant 3 : i32
    %21 = vector.broadcast %c0_i32_7 : i32 to vector<1x256xi32>
    %22 = arith.maxsi %21, %6 : vector<1x256xi32>
    %23 = vector.broadcast %c3_i32 : i32 to vector<1x256xi32>
    %24 = arith.minsi %23, %22 : vector<1x256xi32>
    %25 = vector.broadcast %24 : vector<1x256xi32> to vector<4x256xi32>
    %26 = vector.broadcast %7 : vector<4x1xi32> to vector<4x256xi32>
    %27 = arith.cmpi eq, %25, %26 : vector<4x256xi32>
    %28 = vector.broadcast %20 : vector<1x256xi1> to vector<4x256xi1>
    %29 = arith.andi %27, %28 : vector<4x256xi1>
    %cst_8 = arith.constant 1.000000e+00 : f32
    %cst_9 = arith.constant 0.000000e+00 : f32
    %30 = vector.broadcast %cst_8 : f32 to vector<4x256xf32>
    %31 = vector.broadcast %cst_9 : f32 to vector<4x256xf32>
    %32 = arith.select %29, %30, %31 : vector<4x256xi1>, vector<4x256xf32>
    %33 = arith.mulf %18, %32 : vector<4x256xf32>
    %cst_10 = arith.constant dense<0.000000e+00> : vector<4xf32>
    %34 = vector.multi_reduction <add>, %33, %cst_10 [1] : vector<4x256xf32> to vector<4xf32>
    %35 = vector.shape_cast %34 : vector<4xf32> to vector<4x1xf32>
    %36 = arith.mulf %18, %18 : vector<4x256xf32>
    %cst_11 = arith.constant dense<0.000000e+00> : vector<4xf32>
    %37 = vector.multi_reduction <add>, %36, %cst_11 [1] : vector<4x256xf32> to vector<4xf32>
    %38 = vector.shape_cast %37 : vector<4xf32> to vector<4x1xf32>
    %cst_12 = arith.constant dense<0.000000e+00> : vector<4xf32>
    %39 = vector.multi_reduction <add>, %32, %cst_12 [1] : vector<4x256xf32> to vector<4xf32>
    %40 = vector.shape_cast %39 : vector<4xf32> to vector<4x1xf32>
    %c0_i32_13 = arith.constant 0 : i32
    %41 = vector.broadcast %c0_i32_13 : i32 to vector<1x3xi32>
    %42 = arith.cmpi eq, %8, %41 : vector<1x3xi32>
    %c1_i32 = arith.constant 1 : i32
    %43 = vector.broadcast %c1_i32 : i32 to vector<1x3xi32>
    %44 = arith.cmpi eq, %8, %43 : vector<1x3xi32>
    %45 = vector.shape_cast %44 : vector<1x3xi1> to vector<1x3xi1>
    %46 = vector.broadcast %45 : vector<1x3xi1> to vector<4x3xi1>
    %47 = vector.shape_cast %38 : vector<4x1xf32> to vector<4x1xf32>
    %48 = vector.broadcast %47 : vector<4x1xf32> to vector<4x3xf32>
    %49 = vector.shape_cast %40 : vector<4x1xf32> to vector<4x1xf32>
    %50 = vector.broadcast %49 : vector<4x1xf32> to vector<4x3xf32>
    %51 = arith.select %46, %48, %50 : vector<4x3xi1>, vector<4x3xf32>
    %52 = vector.shape_cast %42 : vector<1x3xi1> to vector<1x3xi1>
    %53 = vector.broadcast %52 : vector<1x3xi1> to vector<4x3xi1>
    %54 = vector.shape_cast %35 : vector<4x1xf32> to vector<4x1xf32>
    %55 = vector.broadcast %54 : vector<4x1xf32> to vector<4x3xf32>
    %56 = arith.select %53, %55, %51 : vector<4x3xi1>, vector<4x3xf32>
    %c0_14 = arith.constant 0 : index
    %c0_15 = arith.constant 0 : index
    %c0_16 = arith.constant 0 : index
    %c0_17 = arith.constant 0 : index
    %57 = vector.load %arg5[%c0_14, %c0_15, %c0_16, %c0_17] : memref<1x1x4x3xf32, #tpu.memory_space<vmem>>, vector<1x1x4x3xf32>
    %58 = vector.shape_cast %57 : vector<1x1x4x3xf32> to vector<4x3xf32>
    %59 = arith.addf %58, %56 : vector<4x3xf32>
    %c0_18 = arith.constant 0 : index
    %c0_19 = arith.constant 0 : index
    %c0_20 = arith.constant 0 : index
    %c0_21 = arith.constant 0 : index
    %60 = vector.load %arg5[%c0_18, %c0_19, %c0_20, %c0_21] : memref<1x1x4x3xf32, #tpu.memory_space<vmem>>, vector<1x1x4x3xf32>
    %61 = vector.shape_cast %60 : vector<1x1x4x3xf32> to vector<4x3xf32>
    %62 = vector.shape_cast %59 : vector<4x3xf32> to vector<1x1x4x3xf32>
    tpu.vector_store %arg5[%c0_18, %c0_19, %c0_20, %c0_21], %62 {strides = array<i32>} : memref<1x1x4x3xf32, #tpu.memory_space<vmem>>, vector<1x1x4x3xf32>,
    return
  }
  func.func @transform_0(%arg0: i32, %arg1: i32, %arg2: i32) -> (i32, i32, i32) {
    %c1_i32 = arith.constant 1 : i32
    %0 = arith.muli %arg0, %c1_i32 : i32
    %1 = arith.addi %0, %arg2 : i32
    %c0_i32 = arith.constant 0 : i32
    %c0_i32_0 = arith.constant 0 : i32
    return %arg1, %c0_i32, %1 : i32, i32, i32
  }
  func.func @transform_1(%arg0: i32, %arg1: i32, %arg2: i32) -> (i32, i32, i32) {
    %c1_i32 = arith.constant 1 : i32
    %0 = arith.muli %arg0, %c1_i32 : i32
    %1 = arith.addi %0, %arg2 : i32
    %c0_i32 = arith.constant 0 : i32
    %c0_i32_0 = arith.constant 0 : i32
    return %arg1, %c0_i32, %1 : i32, i32, i32
  }
  func.func @transform_2(%arg0: i32, %arg1: i32, %arg2: i32) -> (i32, i32, i32, i32) {
    %c0_i32 = arith.constant 0 : i32
    %c0_i32_0 = arith.constant 0 : i32
    %c0_i32_1 = arith.constant 0 : i32
    return %arg0, %arg1, %c0_i32, %c0_i32_0 : i32, i32, i32, i32
  }
}

</mosaic_0001>

<llo_original>
// kernel: tpu_custom_call.1
$region0: #{tpu_custom_call.1}
  #allocation0 [shape = 'u32[]', space=smem, size = 0x4, offset = 0x4, fixed_abs, tag = 'smem constant byte address 0x4 - core index']
  #allocation1 [shape = 'u32[144,128]{1,0:T(1,128)}', space=vmem, size = 0x12000, scoped, tag = 'internal scratch']
  %s0 = inlined_call_operand.hbm [shape: f32[2,4,256], index: 0, kind: input, shape index: {}]
  %s1 = inlined_call_operand.hbm [shape: s32[2,1,256], index: 1, kind: input, shape index: {}]
  %s2 = inlined_call_operand.vmem [shape: f32[1,2,4,3], index: 2, kind: output, shape index: {}]
  %s3 = sld [smem:[#allocation0]]
  $region53: #{tpu_custom_call.1} parent=0
    _
  %s5 = ssub.s32 1, %s3
  %s6 = scalar_select 0, %s5, %s3
  $region1: #{tpu_custom_call.1} parent=0
    #allocation2 [shape = 'u8[8192]{0}', space=vmem, size = 0x2000, scoped, tag = 'input window, operand 0']
    #allocation3 [shape = 's32[2]{0}', space=sflag, size = 0x8, scoped, tag = 'scoped memory for tpu_custom_call.1']
    #allocation4 [shape = 'u8[2048]{0}', space=vmem, size = 0x800, scoped, tag = 'input window, operand 1']
    #allocation5 [shape = 's32[2]{0}', space=sflag, size = 0x8, scoped, tag = 'scoped memory for tpu_custom_call.1']
    %7 = vsyncpa [#allocation3], 0
    %s8 = scalar_lea.sflag [#allocation3], 1
    %9 = vsyncpa %s8, 0
    %10 = vsyncpa [#allocation5], 0
    %s11 = scalar_lea.sflag [#allocation5], 1
    %12 = vsyncpa %s11, 0
    loop: start=0, step=1, limit=4
    $region2: #{tpu_custom_call.1} parent=1 // loop_pre_header
      _
    $region3: #{tpu_custom_call.1} parent=1 // loop_header
      %s14 = sphi 0, %s18
      %p15 = scmp.ge.s32.totalorder %s14, 4
      %s21 = sphi 0, %s40
      %s22 = sphi 0, %s36
      %s23 = sphi 0, %s32
      %s24 = sphi 0, %s21
      %s25 = sphi 0, %s22
      %s26 = sphi 0, %s23
      %s27 = sphi 0, %s24
      %s28 = sphi 0, %s25
      %s29 = sphi 0, %s26
      %s47 = sphi 0, %s49
      %s50 = sphi 0, %s47
      %s51 = sphi 0, %s50
      %s67 = sphi 0, %s51
      %s77 = sphi 0, %s79
      %s80 = sphi 0, %s77
      %s81 = sphi 0, %s80
      %s97 = sphi 0, %s81
      %s105 = sphi 0, %s107
      %s108 = sphi 0, %s105
      %s109 = sphi 0, %s108
      %s125 = sphi 0, %s109
    $region4: #{tpu_custom_call.1} parent=1 // loop_header_branch
      %17 = sbr.rel (%p15) target = $region8
    $region5: #{tpu_custom_call.1} parent=1 // loop_body
      %s19 = ssub.s32 %s14, 1
      %s20 = ssub.s32 %s14, 2
      %s30 = sadd.s32 1, %s23
      %p31 = scmp.ge.s32.totalorder %s30, 1
      %s32 = scalar_select %p31, 0, %s30
      %s33 = sadd.s32 1, %s22
      %s34 = scalar_select %p31, %s33, %s22
      %p35 = scmp.ge.s32.totalorder %s34, 2
      %s36 = scalar_select %p35, 0, %s34
      %s37 = sadd.s32 1, %s21
      %s38 = scalar_select %p35, %s37, %s21
      %p39 = scmp.ge.s32.totalorder %s38, 1
      %s40 = scalar_select %p39, 0, %s38
      %s41 = sadd.s32 %s21, %s23
      %s42 = sadd.s32 %s40, %s32
      %s43 = ssub.s32 %s22, %s36
      %s44 = ssub.s32 %s41, %s42
      %s45 = sor.u32 %s43, %s44
      %p46 = scmp.eq.s32.totalorder %s45, 0
      %s48 = sadd.s32 %s47, 1
      %s49 = scalar_select %p46, %s47, %s48
      %p52 = pneg %p46
      %p53 = scmp.eq.s32.totalorder %s14, 1
      %p54 = por %p52, %p53
      %p55 = scmp.ne.s32.totalorder %s47, %s50
      %p56 = scmp.eq.s32.totalorder %s14, 0
      %p57 = por %p55, %p56
      %p58 = scmp.ne.s32.totalorder %s47, %s50
      %p59 = scmp.eq.s32.totalorder %s19, 1
      %p60 = por %p58, %p59
      %p61 = scmp.ne.s32.totalorder %s50, %s51
      %p62 = scmp.eq.s32.totalorder %s19, 0
      %p63 = por %p61, %p62
      %p64 = scmp.ne.s32.totalorder %s50, %s51
      %p65 = scmp.eq.s32.totalorder %s20, 1
      %p66 = por %p64, %p65
      %p68 = scmp.ne.s32.totalorder %s51, %s67
      %p69 = scmp.eq.s32.totalorder %s20, 0
      %p70 = por %p68, %p69
      %s71 = sadd.s32 %s21, %s23
      %s72 = sadd.s32 %s40, %s32
      %s73 = ssub.s32 %s22, %s36
      %s74 = ssub.s32 %s71, %s72
      %s75 = sor.u32 %s73, %s74
      %p76 = scmp.eq.s32.totalorder %s75, 0
      %s78 = sadd.s32 %s77, 1
      %s79 = scalar_select %p76, %s77, %s78
      %p82 = pneg %p76
      %p83 = scmp.eq.s32.totalorder %s14, 1
      %p84 = por %p82, %p83
      %p85 = scmp.ne.s32.totalorder %s77, %s80
      %p86 = scmp.eq.s32.totalorder %s14, 0
      %p87 = por %p85, %p86
      %p88 = scmp.ne.s32.totalorder %s77, %s80
      %p89 = scmp.eq.s32.totalorder %s19, 1
      %p90 = por %p88, %p89
      %p91 = scmp.ne.s32.totalorder %s80, %s81
      %p92 = scmp.eq.s32.totalorder %s19, 0
      %p93 = por %p91, %p92
      %p94 = scmp.ne.s32.totalorder %s80, %s81
      %p95 = scmp.eq.s32.totalorder %s20, 1
      %p96 = por %p94, %p95
      %p98 = scmp.ne.s32.totalorder %s81, %s97
      %p99 = scmp.eq.s32.totalorder %s20, 0
      %p100 = por %p98, %p99
      %s101 = ssub.s32 %s21, %s40
      %s102 = ssub.s32 %s22, %s36
      %s103 = sor.u32 %s101, %s102
      %p104 = scmp.eq.s32.totalorder %s103, 0
      %s106 = sadd.s32 %s105, 1
      %s107 = scalar_select %p104, %s105, %s106
      %p110 = pneg %p104
      %p111 = scmp.eq.s32.totalorder %s14, 1
      %p112 = por %p110, %p111
      %p113 = scmp.ne.s32.totalorder %s105, %s108
      %p114 = scmp.eq.s32.totalorder %s14, 0
      %p115 = por %p113, %p114
      %p116 = scmp.ne.s32.totalorder %s105, %s108
      %p117 = scmp.eq.s32.totalorder %s19, 1
      %p118 = por %p116, %p117
      %p119 = scmp.ne.s32.totalorder %s108, %s109
      %p120 = scmp.eq.s32.totalorder %s19, 0
      %p121 = por %p119, %p120
      %p122 = scmp.ne.s32.totalorder %s108, %s109
      %p123 = scmp.eq.s32.totalorder %s20, 1
      %p124 = por %p122, %p123
      %p126 = scmp.ne.s32.totalorder %s109, %s125
      %p127 = scmp.eq.s32.totalorder %s20, 0
      %p128 = por %p126, %p127
      %p129 = scmp.le.s32.totalorder 1, %s14
      %p130 = scmp.lt.s32.totalorder %s14, 3
      %p131 = pnand %p129, %p130
      %p132 = pneg %p131
      // Predicated region
      $region9: #{tpu_custom_call.1} parent=5 // pred_check
        _
      $region10: #{tpu_custom_call.1} parent=5 // pred_check_branch
        %134 = sbr.rel (%p131) target = $region12
      $region11: #{tpu_custom_call.1} parent=5 // pred_region
        %s135 = ssub.s32 %s14, 1
      $region12: #{tpu_custom_call.1} parent=5 // pred_fallthru
        _
      %p136 = scmp.lt.s32.totalorder %s14, 2
      // Predicated region
      $region13: #{tpu_custom_call.1} parent=5 // pred_check
        %p137 = pneg %p136
      $region14: #{tpu_custom_call.1} parent=5 // pred_check_branch
        %139 = sbr.rel (%p137) target = $region16
      $region15: #{tpu_custom_call.1} parent=5 // pred_region
        // Predicated region
        $region17: #{tpu_custom_call.1} parent=15 // pred_check
          %p140 = pneg %p57
        $region18: #{tpu_custom_call.1} parent=15 // pred_check_branch
          %142 = sbr.rel (%p140) target = $region20
        $region19: #{tpu_custom_call.1} parent=15 // pred_region
          %s143 = sand.u32 %s47, 1
          %s144 = scalar_lea.sflag [#allocation3], %s143
          %s145 = sand.u32 %s47, 1
          %s146 = smul.addr %s145, 8
          %s147 = scalar_lea.vmem [#allocation2], %s146
          %s148 = sadd.s32 %s21, %s23
          %s149 = smul.u32 2, %s148
          %s151 = ssub.s32 128, 128
          %152 = vsyncadd %s144, %s151
          %s153 = smul.addr %s22, 2
          %s154 = sadd.s32 %s149, %s153
          %s155 = smul.addr %s154, 64
          %s156 = scalar_lea.hbm %s0, %s155
          %s158 = sshll.u32 %s147, 4
          %s159 = int_to_ptr.vmem [resolvable:$true] %s158
          %161 = dma.hbm_to_vmem [thread:$0]  %s156, 128, %s159, %s144
        $region20: #{tpu_custom_call.1} parent=15 // pred_fallthru
          _
        // Predicated region
        $region21: #{tpu_custom_call.1} parent=15 // pred_check
          %p162 = pneg %p87
        $region22: #{tpu_custom_call.1} parent=15 // pred_check_branch
          %164 = sbr.rel (%p162) target = $region24
        $region23: #{tpu_custom_call.1} parent=15 // pred_region
          %s165 = sand.u32 %s77, 1
          %s166 = scalar_lea.sflag [#allocation5], %s165
          %s167 = sand.u32 %s77, 1
          %s168 = smul.addr %s167, 2
          %s169 = scalar_lea.vmem [#allocation4], %s168
          %s170 = sadd.s32 %s21, %s23
          %s171 = smul.u32 2, %s170
          %s173 = ssub.s32 32, 32
          %174 = vsyncadd %s166, %s173
          %s175 = smul.addr %s22, 2
          %s176 = sadd.s32 %s171, %s175
          %s177 = smul.addr %s176, 16
          %s178 = scalar_lea.hbm %s1, %s177
          %s180 = sshll.u32 %s169, 4
          %s181 = int_to_ptr.vmem [resolvable:$true] %s180
          %183 = dma.hbm_to_vmem [thread:$0]  %s178, 32, %s181, %s166
        $region24: #{tpu_custom_call.1} parent=15 // pred_fallthru
          _
      $region16: #{tpu_custom_call.1} parent=5 // pred_fallthru
        _
      %p184 = scmp.le.s32.totalorder 1, %s14
      %p185 = scmp.lt.s32.totalorder %s14, 3
      %p186 = pnand %p184, %p185
      %p187 = pneg %p186
      // Predicated region
      $region25: #{tpu_custom_call.1} parent=5 // pred_check
        _
      $region26: #{tpu_custom_call.1} parent=5 // pred_check_branch
        %189 = sbr.rel (%p186) target = $region28
      $region27: #{tpu_custom_call.1} parent=5 // pred_region
        %s190 = ssub.s32 %s14, 1
        %s191 = sand.u32 %s50, 1
        %s192 = scalar_lea.sflag [#allocation3], %s191
        %s193 = sand.u32 %s50, 1
        %s194 = smul.addr %s193, 8
        %s195 = scalar_lea.vmem [#allocation2], %s194
        // Predicated region
        $region29: #{tpu_custom_call.1} parent=27 // pred_check
          %p196 = pneg %p63
        $region30: #{tpu_custom_call.1} parent=27 // pred_check_branch
          %198 = sbr.rel (%p196) target = $region32
        $region31: #{tpu_custom_call.1} parent=27 // pred_region
          %199 = dma.done %s192, 128
        $region32: #{tpu_custom_call.1} parent=27 // pred_fallthru
          _
        %s200 = sand.u32 %s80, 1
        %s201 = scalar_lea.sflag [#allocation5], %s200
        %s202 = sand.u32 %s80, 1
        %s203 = smul.addr %s202, 2
        %s204 = scalar_lea.vmem [#allocation4], %s203
        // Predicated region
        $region33: #{tpu_custom_call.1} parent=27 // pred_check
          %p205 = pneg %p93
        $region34: #{tpu_custom_call.1} parent=27 // pred_check_branch
          %207 = sbr.rel (%p205) target = $region36
        $region35: #{tpu_custom_call.1} parent=27 // pred_region
          %208 = dma.done %s201, 32
        $region36: #{tpu_custom_call.1} parent=27 // pred_fallthru
          _
        %s209 = sand.u32 %s50, 1
        %s210 = scalar_lea.sflag [#allocation3], %s209
        %s211 = sand.u32 %s50, 1
        %s212 = smul.addr %s211, 8
        %s213 = scalar_lea.vmem [#allocation2], %s212
        %p214 = pneg %p63
        %p215 = pneg %p60
        %s216 = sand.u32 %s80, 1
        %s217 = scalar_lea.sflag [#allocation5], %s216
        %s218 = sand.u32 %s80, 1
        %s219 = smul.addr %s218, 2
        %s220 = scalar_lea.vmem [#allocation4], %s219
        %p221 = pneg %p93
        %p222 = pneg %p90
        %p223 = pneg %p121
        %p224 = pneg %p118
        %p225 = scmp.lt.s32.totalorder %s24, 0
        %s226 = scalar_select %p225, %s24, 0
        %p227 = scmp.lt.s32.totalorder %s25, 1
        %s228 = scalar_select %p227, %s25, 1
        %s229 = smul.addr %s226, 2
        %s230 = sadd.s32 %s228, %s229
        %s231 = smul.addr %s230, 4
        %s232 = scalar_lea.vmem %s2, %s231
        %s233 = sadd.s32 %s24, %s26
        %s234 = smul.u32 2, %s233
        %s235 = sadd.s32 %s24, %s26
        %s236 = smul.u32 2, %s235
        %p237 = scmp.lt.s32.totalorder %s24, 0
        %s238 = scalar_select %p237, %s24, 0
        %p239 = scmp.lt.s32.totalorder %s25, 1
        %s240 = scalar_select %p239, %s25, 1
        %s241 = smul.addr %s238, 2
        %s242 = sadd.s32 %s240, %s241
        %s243 = smul.addr %s242, 4
        %s244 = scalar_lea.vmem %s2, %s243
        %p245 = scmp.eq.s32.totalorder %s26, 0
        // Predicated region
        $region37: #{tpu_custom_call.1} parent=27 // pred_check
          %p246 = pneg %p245
        $region38: #{tpu_custom_call.1} parent=27 // pred_check_branch
          %248 = sbr.rel (%p246) target = $region40
        $region39: #{tpu_custom_call.1} parent=27 // pred_region
          %vm249 = vcmask 19456
          %250 = vst.msk [vmem:[%s244] sm:$0xf] %vm249, 0.0
        $region40: #{tpu_custom_call.1} parent=27 // pred_fallthru
          _
        %v251 = vld [vmem:[%s195] sm:$0xff]
        %v252 = vld [vmem:[%s204] sm:$0x3]
        %v253 = vlaneseq
        %v254 = vshrl.u32 %v253, 7
        %v255 = vlaneseq
        %v256 = vand.u32 %v255, 127
        %v258 = vcombine.high %v251, %v251
        %vm260 = vcmask 1043456
        %v261 = vsel %vm260, %v251, -inf
        %v262 = vrot.slane %v261, 4
        %v263 = vmax.f32 %v261, %v262
        %v264 = vrot.slane %v263, 2
        %v265 = vmax.f32 %v263, %v264
        %v266 = vrot.slane %v265, 1
        %v267 = vmax.f32 %v265, %v266
        %v268 = vsel %vm260, %v258, -inf
        %v269 = vrot.slane %v268, 4
        %v270 = vmax.f32 %v268, %v269
        %v271 = vrot.slane %v270, 2
        %v272 = vmax.f32 %v270, %v271
        %v273 = vrot.slane %v272, 1
        %v274 = vmax.f32 %v272, %v273
        %v277 = vcombine.low %v267, %v274
        %v279 = vsub.f32 %v251, %v277
        %v280 = vmul.f32 %v279, 1.442695
        %v281 = vpow.pop %v280
        %v283 = vcombine.high %v281, %v281
        %v285 = vsel %vm260, %v281, 0.0
        %v286 = vrot.slane %v285, 4
        %v287 = vadd.f32 %v285, %v286
        %v288 = vrot.slane %v287, 2
        %v289 = vadd.f32 %v287, %v288
        %v290 = vrot.slane %v289, 1
        %v291 = vadd.f32 %v289, %v290
        %v292 = vsel %vm260, %v283, 0.0
        %v293 = vrot.slane %v292, 4
        %v294 = vadd.f32 %v292, %v293
        %v295 = vrot.slane %v294, 2
        %v296 = vadd.f32 %v294, %v295
        %v297 = vrot.slane %v296, 1
        %v298 = vadd.f32 %v296, %v297
        %v299 = vrcp.pop %v291
        %v300 = vrcp.pop %v298
        %v303 = vcombine.low %v299, %v300
        %v305 = vmul.f32 %v281, %v303
        %vm306 = vcmp.ne.s32.totalorder %v252, 255
        %vm307 = vcmp.gt.s32.totalorder %v252, 0
        %v308 = vsel %vm307, %v252, 0
        %vm309 = vcmp.lt.s32.totalorder %v308, 3
        %v310 = vsel %vm309, %v308, 3
        %v311 = vlaneseq
        %v312 = vshrl.u32 %v311, 7
        %v313 = vsub.s32 0, %v312
        %v314 = vrot.slane %v310, %v313
        %v315 = vlaneseq
        %v316 = vshrl.u32 %v315, 7
        %v317 = vsub.s32 1, %v316
        %v318 = vrot.slane %v310, %v317
        %vm319 = vcmp.eq.s32.totalorder %v314, %v254
        %vm320 = vcmp.eq.s32.totalorder %v318, %v254
        %v321 = vsel %vm306, 1, 0
        %v322 = vlaneseq
        %v323 = vshrl.u32 %v322, 7
        %v324 = vsub.s32 0, %v323
        %v325 = vrot.slane %v321, %v324
        %v326 = vlaneseq
        %v327 = vshrl.u32 %v326, 7
        %v328 = vsub.s32 1, %v327
        %v329 = vrot.slane %v321, %v328
        %vm330 = vcmp.eq.s32.totalorder %v325, 1
        %vm331 = vcmp.eq.s32.totalorder %v329, 1
        %vm332 = vmand %vm319, %vm330
        %vm333 = vmand %vm320, %vm331
        %v334 = vsel %vm332, 1.0, 0.0
        %v335 = vsel %vm333, 1.0, 0.0
        %v338 = vcombine.low %v334, %v335
        %v340 = vmul.f32 %v305, %v338
        %v342 = vcombine.high %v340, %v340
        %v344 = vsel %vm260, %v340, 0.0
        %v345 = vsel %vm260, %v342, 0.0
        %v346 = vadd.f32 %v344, %v345
        %347 = vadd.xlane.f32.xlu0 %v346
        %v348 = vpop.xlane.xlu0 %347
        %v349 = vmul.f32 %v305, %v305
        %v351 = vcombine.high %v349, %v349
        %v353 = vsel %vm260, %v349, 0.0
        %v354 = vsel %vm260, %v351, 0.0
        %v355 = vadd.f32 %v353, %v354
        %356 = vadd.xlane.f32.xlu0 %v355
        %v357 = vpop.xlane.xlu0 %356
        %v358 = vsel %vm260, %v334, 0.0
        %v359 = vsel %vm260, %v335, 0.0
        %v360 = vadd.f32 %v358, %v359
        %361 = vadd.xlane.f32.xlu0 %v360
        %v362 = vpop.xlane.xlu0 %361
        %vm363 = vcmp.eq.s32.totalorder %v256, 0
        %vm364 = vcmp.eq.s32.totalorder %v256, 1
        %v365 = vsel %vm364, 1, 0
        %vm366 = vcmp.eq.s32.totalorder %v365, 1
        %v367 = vsel %vm366, %v357, %v362
        %v368 = vsel %vm363, 1, 0
        %vm369 = vcmp.eq.s32.totalorder %v368, 1
        %v370 = vsel %vm369, %v348, %v367
        %v371 = vld [vmem:[%s244] sm:$0xf]
        %v372 = vadd.f32 %v371, %v370
        %vm373 = vcmask 19456
        %374 = vst.msk [vmem:[%s244] sm:$0xf] %vm373, %v372
        %p375 = scmp.lt.s32.totalorder %s24, 0
        %s376 = scalar_select %p375, %s24, 0
        %p377 = scmp.lt.s32.totalorder %s25, 1
        %s378 = scalar_select %p377, %s25, 1
        %s379 = smul.addr %s376, 2
        %s380 = sadd.s32 %s378, %s379
        %s381 = smul.addr %s380, 4
        %s382 = scalar_lea.vmem %s2, %s381
        // Predicated region
        $region41: #{tpu_custom_call.1} parent=27 // pred_check
          %p383 = pneg %p118
        $region42: #{tpu_custom_call.1} parent=27 // pred_check_branch
          %385 = sbr.rel (%p383) target = $region44
        $region43: #{tpu_custom_call.1} parent=27 // pred_region
          _
        $region44: #{tpu_custom_call.1} parent=27 // pred_fallthru
          _
      $region28: #{tpu_custom_call.1} parent=5 // pred_fallthru
        _
      %p386 = scmp.le.s32.totalorder 2, %s14
      // Predicated region
      $region45: #{tpu_custom_call.1} parent=5 // pred_check
        %p387 = pneg %p386
      $region46: #{tpu_custom_call.1} parent=5 // pred_check_branch
        %389 = sbr.rel (%p387) target = $region48
      $region47: #{tpu_custom_call.1} parent=5 // pred_region
        %s390 = ssub.s32 %s14, 2
        // Predicated region
        $region49: #{tpu_custom_call.1} parent=47 // pred_check
          %p391 = pneg %p124
        $region50: #{tpu_custom_call.1} parent=47 // pred_check_branch
          %393 = sbr.rel (%p391) target = $region52
        $region51: #{tpu_custom_call.1} parent=47 // pred_region
          %p394 = scmp.lt.s32.totalorder %s27, 0
          %s395 = scalar_select %p394, %s27, 0
          %p396 = scmp.lt.s32.totalorder %s28, 1
          %s397 = scalar_select %p396, %s28, 1
          %s398 = smul.addr %s395, 2
          %s399 = sadd.s32 %s397, %s398
          %s400 = smul.addr %s399, 4
          %s401 = scalar_lea.vmem %s2, %s400
        $region52: #{tpu_custom_call.1} parent=47 // pred_fallthru
          _
      $region48: #{tpu_custom_call.1} parent=5 // pred_fallthru
        _
    $region6: #{tpu_custom_call.1} parent=1 // loop_footer
      %s18 = sadd.s32 1, %s14
    $region7: #{tpu_custom_call.1} parent=1 // loop_footer_branch
      %13 = sbr.rel target = $region3
    $region8: #{tpu_custom_call.1} parent=1 // loop_exit
      _
    %402 = vsyncpa [#allocation3], 1
    %s403 = scalar_lea.sflag [#allocation3], 1
    %404 = vsyncpa %s403, 1
    %405 = vsyncpa [#allocation5], 1
    %s406 = scalar_lea.sflag [#allocation5], 1
    %407 = vsyncpa %s406, 1

</llo_original>
